<compile_context>
chip_gen: v5e
topology: v5e:2x2
jax: 0.10.0
libtpu: 0.0.40
codegen_flags: <defaults>
</compile_context>

<pallas_src>
import numpy as np
import jax
import jax.numpy as jnp
from jax.experimental import pallas as pl
from jax.experimental.pallas import tpu as pltpu

_INV_SQRT_2PI = 1.0 / np.sqrt(2.0 * np.pi)
_INV_SQRT_2 = 1.0 / np.sqrt(2.0)

# ~2 MiB per f32 operand block: 4 streams x 2 buffers x 2 MiB ~= 16 MiB VMEM.
_TARGET_BLOCK_ELEMS = 512 * 1024


def _adf_relu_kernel(mean_ref, var_ref, out_mean_ref, out_var_ref):
    m = mean_ref[...]
    v = var_ref[...]
    # stddev and 1/stddev both on the EUP (free slot for a mem-bound kernel).
    s = jnp.sqrt(v)
    div = m * jax.lax.rsqrt(v)
    # standard normal pdf / cdf of `div`
    pdf = jnp.exp(-0.5 * div * div) * _INV_SQRT_2PI
    cdf = 0.5 * (1.0 + jax.lax.erf(div * _INV_SQRT_2))
    out_mean = m * cdf + s * pdf
    out_var = (m * m + v) * cdf + m * s * pdf - out_mean * out_mean
    out_mean_ref[...] = out_mean
    out_var_ref[...] = out_var


def _round_up(x, m):
    return (x + m - 1) // m * m


def _cdiv(a, b):
    return -(-a // b)


def _choose_layout(total):
    """Pick (lanes, block_rows, rows) for a lane-dense 2-D slab layout."""
    # Lane width: largest candidate that still leaves >= 2 minimal row-blocks.
    lanes = 128
    for cand in (2048, 1024, 512, 256):
        if total >= 2 * 8 * cand:
            lanes = cand
            break
    est_rows = _round_up(_cdiv(total, lanes), 8)
    # Row-block sized toward the ~2 MiB/operand target (multiple of 8 rows).
    block_rows = max(8, (min(_TARGET_BLOCK_ELEMS // lanes, est_rows) // 8) * 8)
    # Keep >= 2 grid steps when there is enough work (v7x megacore sharding).
    if est_rows >= 16:
        block_rows = min(block_rows, max(8, _round_up(_cdiv(est_rows, 2), 8)))
    rows = _round_up(est_rows, block_rows)
    return lanes, block_rows, rows


def adf_relu(features_mean, features_variance, keep_variance_fn=None):
    assert features_mean.shape == features_variance.shape
    orig_shape = features_mean.shape
    dtype = features_mean.dtype

    total = int(np.prod(orig_shape))
    lanes, block_rows, rows = _choose_layout(total)
    padded_total = rows * lanes
    pad = padded_total - total

    def _prep(x, pad_value):
        # Fast path: reshape of a contiguous array is free (no HBM traffic).
        if pad == 0:
            return jnp.reshape(x, (rows, lanes))
        x = jnp.ravel(x)
        x = jnp.pad(x, (0, pad), constant_values=pad_value)
        return x.reshape(rows, lanes)

    m2d = _prep(features_mean, 0.0)
    # Pad variance with 1.0 so sqrt/rsqrt stay finite on discarded elements.
    v2d = _prep(features_variance, 1.0)
    grid = (rows // block_rows,)

    spec = pl.BlockSpec((block_rows, lanes), lambda i: (i, 0))
    block_bytes = block_rows * lanes * jnp.dtype(dtype).itemsize
    # 2 inputs + 2 outputs, double-buffered, plus headroom; stays < 64 MiB
    # physical VMEM on v7x and well under 128 MiB on v5e/v6e.
    vmem_limit = min(48 << 20, max(8 << 20, 4 * 2 * block_bytes * 2))

    out_mean2d, out_var2d = pl.pallas_call(
        _adf_relu_kernel,
        out_shape=(
            jax.ShapeDtypeStruct((rows, lanes), dtype),
            jax.ShapeDtypeStruct((rows, lanes), dtype),
        ),
        grid_spec=pltpu.PrefetchScalarGridSpec(
            num_scalar_prefetch=0,
            grid=grid,
            in_specs=[spec, spec],
            out_specs=[spec, spec],
        ),
        compiler_params=pltpu.CompilerParams(
            dimension_semantics=("parallel",),
            vmem_limit_bytes=int(vmem_limit),
        ),
        cost_estimate=pl.CostEstimate(
            flops=20 * padded_total,
            transcendentals=4 * padded_total,
            bytes_accessed=4 * padded_total * jnp.dtype(dtype).itemsize,
        ),
    )(m2d, v2d)

    if pad == 0:
        out_mean = out_mean2d.reshape(orig_shape)
        out_var = out_var2d.reshape(orig_shape)
    else:
        out_mean = out_mean2d.reshape(-1)[:total].reshape(orig_shape)
        out_var = out_var2d.reshape(-1)[:total].reshape(orig_shape)

    if keep_variance_fn is not None:
        out_var = keep_variance_fn(out_var)
    return out_mean, out_var


def _reference(features_mean, features_variance):
    s = jnp.sqrt(features_variance)
    div = features_mean / s
    pdf = jnp.exp(-0.5 * div * div) * _INV_SQRT_2PI
    cdf = 0.5 * (1.0 + jax.lax.erf(div * _INV_SQRT_2))
    om = features_mean * cdf + s * pdf
    ov = (features_mean ** 2 + features_variance) * cdf \
        + features_mean * s * pdf - om ** 2
    return om, ov


if __name__ == "__main__":
    key = jax.random.PRNGKey(0)
    k1, k2 = jax.random.split(key)
    # NCHW, small shapes: batch=2, channels=4, spatial=16x16
    features_mean = jax.random.normal(k1, (2, 4, 16, 16), dtype=jnp.float32)
    # variance must be positive
    features_variance = jax.random.uniform(
        k2, (2, 4, 16, 16), dtype=jnp.float32, minval=0.1, maxval=2.0)

    out_mean, out_var = adf_relu(features_mean, features_variance)
    out_mean = jax.block_until_ready(out_mean)
    out_var = jax.block_until_ready(out_var)

    ref_mean, ref_var = _reference(features_mean, features_variance)
    np.testing.assert_allclose(np.asarray(out_mean), np.asarray(ref_mean),
                               rtol=1e-5, atol=1e-5)
    np.testing.assert_allclose(np.asarray(out_var), np.asarray(ref_var),
                               rtol=1e-5, atol=1e-5)
    print("KERNEL_OK")
</pallas_src>

<mosaic_0001>
module attributes {stable_mosaic.version = 11 : i64} {
  func.func @_adf_relu_kernel(%arg0: i32, %arg1: memref<8x128xf32, #tpu.memory_space<vmem>>, %arg2: memref<8x128xf32, #tpu.memory_space<vmem>>, %arg3: memref<8x128xf32, #tpu.memory_space<vmem>>, %arg4: memref<8x128xf32, #tpu.memory_space<vmem>>) attributes {dimension_semantics = [#tpu.dimension_semantics<parallel>], iteration_bounds = array<i64: 2>, scalar_prefetch = 0 : i64, scratch_operands = 0 : i64, tpu.core_type = #tpu.core_type<tc>, window_params = [{transform_indices = @transform_0, window_bounds = array<i64: 8, 128>}, {transform_indices = @transform_1, window_bounds = array<i64: 8, 128>}, {transform_indices = @transform_2, window_bounds = array<i64: 8, 128>}, {transform_indices = @transform_3, window_bounds = array<i64: 8, 128>}]} {
    %c0 = arith.constant 0 : index
    %c0_0 = arith.constant 0 : index
    %0 = vector.load %arg1[%c0, %c0_0] : memref<8x128xf32, #tpu.memory_space<vmem>>, vector<8x128xf32>
    %c0_1 = arith.constant 0 : index
    %c0_2 = arith.constant 0 : index
    %1 = vector.load %arg2[%c0_1, %c0_2] : memref<8x128xf32, #tpu.memory_space<vmem>>, vector<8x128xf32>
    %2 = math.sqrt %1 : vector<8x128xf32>
    %3 = math.rsqrt %1 : vector<8x128xf32>
    %4 = arith.mulf %0, %3 : vector<8x128xf32>
    %cst = arith.constant -5.000000e-01 : f32
    %5 = vector.broadcast %cst : f32 to vector<8x128xf32>
    %6 = arith.mulf %5, %4 : vector<8x128xf32>
    %7 = arith.mulf %6, %4 : vector<8x128xf32>
    %8 = math.exp %7 : vector<8x128xf32>
    %cst_3 = arith.constant 0.398942292 : f32
    %9 = vector.broadcast %cst_3 : f32 to vector<8x128xf32>
    %10 = arith.mulf %8, %9 : vector<8x128xf32>
    %cst_4 = arith.constant 0.707106769 : f32
    %11 = vector.broadcast %cst_4 : f32 to vector<8x128xf32>
    %12 = arith.mulf %4, %11 : vector<8x128xf32>
    %13 = math.erf %12 : vector<8x128xf32>
    %cst_5 = arith.constant 1.000000e+00 : f32
    %14 = vector.broadcast %cst_5 : f32 to vector<8x128xf32>
    %15 = arith.addf %14, %13 : vector<8x128xf32>
    %cst_6 = arith.constant 5.000000e-01 : f32
    %16 = vector.broadcast %cst_6 : f32 to vector<8x128xf32>
    %17 = arith.mulf %16, %15 : vector<8x128xf32>
    %18 = arith.mulf %0, %17 : vector<8x128xf32>
    %19 = arith.mulf %2, %10 : vector<8x128xf32>
    %20 = arith.addf %18, %19 : vector<8x128xf32>
    %21 = arith.mulf %0, %0 : vector<8x128xf32>
    %22 = arith.addf %21, %1 : vector<8x128xf32>
    %23 = arith.mulf %22, %17 : vector<8x128xf32>
    %24 = arith.mulf %0, %2 : vector<8x128xf32>
    %25 = arith.mulf %24, %10 : vector<8x128xf32>
    %26 = arith.addf %23, %25 : vector<8x128xf32>
    %27 = arith.mulf %20, %20 : vector<8x128xf32>
    %28 = arith.subf %26, %27 : vector<8x128xf32>
    %c0_7 = arith.constant 0 : index
    %c0_8 = arith.constant 0 : index
    %29 = vector.load %arg3[%c0_7, %c0_8] : memref<8x128xf32, #tpu.memory_space<vmem>>, vector<8x128xf32>
    tpu.vector_store %arg3[%c0_7, %c0_8], %20 {strides = array<i32>} : memref<8x128xf32, #tpu.memory_space<vmem>>, vector<8x128xf32>,
    %c0_9 = arith.constant 0 : index
    %c0_10 = arith.constant 0 : index
    %30 = vector.load %arg4[%c0_9, %c0_10] : memref<8x128xf32, #tpu.memory_space<vmem>>, vector<8x128xf32>
    tpu.vector_store %arg4[%c0_9, %c0_10], %28 {strides = array<i32>} : memref<8x128xf32, #tpu.memory_space<vmem>>, vector<8x128xf32>,
    return
  }
  func.func @transform_0(%arg0: i32) -> (i32, i32) {
    %c0_i32 = arith.constant 0 : i32
    %c0_i32_0 = arith.constant 0 : i32
    return %arg0, %c0_i32 : i32, i32
  }
  func.func @transform_1(%arg0: i32) -> (i32, i32) {
    %c0_i32 = arith.constant 0 : i32
    %c0_i32_0 = arith.constant 0 : i32
    return %arg0, %c0_i32 : i32, i32
  }
  func.func @transform_2(%arg0: i32) -> (i32, i32) {
    %c0_i32 = arith.constant 0 : i32
    %c0_i32_0 = arith.constant 0 : i32
    return %arg0, %c0_i32 : i32, i32
  }
  func.func @transform_3(%arg0: i32) -> (i32, i32) {
    %c0_i32 = arith.constant 0 : i32
    %c0_i32_0 = arith.constant 0 : i32
    return %arg0, %c0_i32 : i32, i32
  }
}

</mosaic_0001>

<llo_original>
// kernel: tpu_custom_call.1
$region0: #{tpu_custom_call.1}
  #allocation0 [shape = 'u32[]', space=smem, size = 0x4, offset = 0x4, fixed_abs, tag = 'smem constant byte address 0x4 - core index']
  #allocation1 [shape = 'u32[72,128]{1,0:T(1,128)}', space=vmem, size = 0x9000, scoped, tag = 'internal scratch']
  %s0 = inlined_call_operand.hbm [shape: f32[16,128], index: 0, kind: input, shape index: {}]
  %s1 = inlined_call_operand.hbm [shape: f32[16,128], index: 1, kind: input, shape index: {}]
  %s2 = inlined_call_operand.hbm [shape: f32[16,128], index: 2, kind: output, shape index: {0}]
  %s3 = inlined_call_operand.hbm [shape: f32[16,128], index: 3, kind: output, shape index: {1}]
  %4 = xla_tuple %s2, %s3
  %s5 = sld [smem:[#allocation0]]
  $region57: #{tpu_custom_call.1} parent=0
    _
  %s7 = ssub.s32 1, %s5
  %s8 = scalar_select 0, %s7, %s5
  $region1: #{tpu_custom_call.1} parent=0
    #allocation2 [shape = 'u8[8192]{0}', space=vmem, size = 0x2000, scoped, tag = 'input window, operand 0']
    #allocation3 [shape = 's32[2]{0}', space=sflag, size = 0x8, scoped, tag = 'scoped memory for tpu_custom_call.1']
    #allocation4 [shape = 's32[2]{0}', space=sflag, size = 0x8, scoped, tag = 'scoped memory for tpu_custom_call.1']
    #allocation5 [shape = 'u8[8192]{0}', space=vmem, size = 0x2000, scoped, tag = 'input window, operand 1']
    #allocation6 [shape = 's32[2]{0}', space=sflag, size = 0x8, scoped, tag = 'scoped memory for tpu_custom_call.1']
    #allocation7 [shape = 'u8[8192]{0}', space=vmem, size = 0x2000, scoped, tag = 'output window, operand 0']
    #allocation8 [shape = 'u8[8192]{0}', space=vmem, size = 0x2000, scoped, tag = 'output window, operand 1']
    #allocation9 [shape = 's32[2]{0}', space=sflag, size = 0x8, scoped, tag = 'scoped memory for tpu_custom_call.1']
    %9 = vsyncpa [#allocation3], 0
    %s10 = scalar_lea.sflag [#allocation3], 1
    %11 = vsyncpa %s10, 0
    %12 = vsyncpa [#allocation6], 0
    %s13 = scalar_lea.sflag [#allocation6], 1
    %14 = vsyncpa %s13, 0
    %15 = vsyncpa [#allocation4], 0
    %s16 = scalar_lea.sflag [#allocation4], 1
    %17 = vsyncpa %s16, 0
    %18 = vsyncpa [#allocation9], 0
    %s19 = scalar_lea.sflag [#allocation9], 1
    %20 = vsyncpa %s19, 0
    loop: start=0, step=1, limit=4
    $region2: #{tpu_custom_call.1} parent=1 // loop_pre_header
      _
    $region3: #{tpu_custom_call.1} parent=1 // loop_header
      %s22 = sphi 0, %s26
      %p23 = scmp.ge.s32.totalorder %s22, 4
      %s32 = sphi 0, %s34
      %s35 = sphi 0, %s32
      %s36 = sphi 0, %s35
      %s52 = sphi 0, %s36
      %s58 = sphi 0, %s60
      %s61 = sphi 0, %s58
      %s62 = sphi 0, %s61
      %s78 = sphi 0, %s62
      %s84 = sphi 0, %s86
      %s87 = sphi 0, %s84
      %s88 = sphi 0, %s87
      %s104 = sphi 0, %s88
      %s110 = sphi 0, %s112
      %s113 = sphi 0, %s110
      %s114 = sphi 0, %s113
      %s130 = sphi 0, %s114
    $region4: #{tpu_custom_call.1} parent=1 // loop_header_branch
      %25 = sbr.rel (%p23) target = $region8
    $region5: #{tpu_custom_call.1} parent=1 // loop_body
      %s27 = ssub.s32 %s22, 1
      %s28 = ssub.s32 %s22, 2
      %s29 = sadd.s32 %s22, 1
      %s30 = ssub.s32 %s22, %s29
      %p31 = scmp.eq.s32.totalorder %s30, 0
      %s33 = sadd.s32 %s32, 1
      %s34 = scalar_select %p31, %s32, %s33
      %p37 = pneg %p31
      %p38 = scmp.eq.s32.totalorder %s22, 1
      %p39 = por %p37, %p38
      %p40 = scmp.ne.s32.totalorder %s32, %s35
      %p41 = scmp.eq.s32.totalorder %s22, 0
      %p42 = por %p40, %p41
      %p43 = scmp.ne.s32.totalorder %s32, %s35
      %p44 = scmp.eq.s32.totalorder %s27, 1
      %p45 = por %p43, %p44
      %p46 = scmp.ne.s32.totalorder %s35, %s36
      %p47 = scmp.eq.s32.totalorder %s27, 0
      %p48 = por %p46, %p47
      %p49 = scmp.ne.s32.totalorder %s35, %s36
      %p50 = scmp.eq.s32.totalorder %s28, 1
      %p51 = por %p49, %p50
      %p53 = scmp.ne.s32.totalorder %s36, %s52
      %p54 = scmp.eq.s32.totalorder %s28, 0
      %p55 = por %p53, %p54
      %s56 = ssub.s32 %s22, %s29
      %p57 = scmp.eq.s32.totalorder %s56, 0
      %s59 = sadd.s32 %s58, 1
      %s60 = scalar_select %p57, %s58, %s59
      %p63 = pneg %p57
      %p64 = scmp.eq.s32.totalorder %s22, 1
      %p65 = por %p63, %p64
      %p66 = scmp.ne.s32.totalorder %s58, %s61
      %p67 = scmp.eq.s32.totalorder %s22, 0
      %p68 = por %p66, %p67
      %p69 = scmp.ne.s32.totalorder %s58, %s61
      %p70 = scmp.eq.s32.totalorder %s27, 1
      %p71 = por %p69, %p70
      %p72 = scmp.ne.s32.totalorder %s61, %s62
      %p73 = scmp.eq.s32.totalorder %s27, 0
      %p74 = por %p72, %p73
      %p75 = scmp.ne.s32.totalorder %s61, %s62
      %p76 = scmp.eq.s32.totalorder %s28, 1
      %p77 = por %p75, %p76
      %p79 = scmp.ne.s32.totalorder %s62, %s78
      %p80 = scmp.eq.s32.totalorder %s28, 0
      %p81 = por %p79, %p80
      %s82 = ssub.s32 %s22, %s29
      %p83 = scmp.eq.s32.totalorder %s82, 0
      %s85 = sadd.s32 %s84, 1
      %s86 = scalar_select %p83, %s84, %s85
      %p89 = pneg %p83
      %p90 = scmp.eq.s32.totalorder %s22, 1
      %p91 = por %p89, %p90
      %p92 = scmp.ne.s32.totalorder %s84, %s87
      %p93 = scmp.eq.s32.totalorder %s22, 0
      %p94 = por %p92, %p93
      %p95 = scmp.ne.s32.totalorder %s84, %s87
      %p96 = scmp.eq.s32.totalorder %s27, 1
      %p97 = por %p95, %p96
      %p98 = scmp.ne.s32.totalorder %s87, %s88
      %p99 = scmp.eq.s32.totalorder %s27, 0
      %p100 = por %p98, %p99
      %p101 = scmp.ne.s32.totalorder %s87, %s88
      %p102 = scmp.eq.s32.totalorder %s28, 1
      %p103 = por %p101, %p102
      %p105 = scmp.ne.s32.totalorder %s88, %s104
      %p106 = scmp.eq.s32.totalorder %s28, 0
      %p107 = por %p105, %p106
      %s108 = ssub.s32 %s22, %s29
      %p109 = scmp.eq.s32.totalorder %s108, 0
      %s111 = sadd.s32 %s110, 1
      %s112 = scalar_select %p109, %s110, %s111
      %p115 = pneg %p109
      %p116 = scmp.eq.s32.totalorder %s22, 1
      %p117 = por %p115, %p116
      %p118 = scmp.ne.s32.totalorder %s110, %s113
      %p119 = scmp.eq.s32.totalorder %s22, 0
      %p120 = por %p118, %p119
      %p121 = scmp.ne.s32.totalorder %s110, %s113
      %p122 = scmp.eq.s32.totalorder %s27, 1
      %p123 = por %p121, %p122
      %p124 = scmp.ne.s32.totalorder %s113, %s114
      %p125 = scmp.eq.s32.totalorder %s27, 0
      %p126 = por %p124, %p125
      %p127 = scmp.ne.s32.totalorder %s113, %s114
      %p128 = scmp.eq.s32.totalorder %s28, 1
      %p129 = por %p127, %p128
      %p131 = scmp.ne.s32.totalorder %s114, %s130
      %p132 = scmp.eq.s32.totalorder %s28, 0
      %p133 = por %p131, %p132
      %p134 = scmp.le.s32.totalorder 1, %s22
      %p135 = scmp.lt.s32.totalorder %s22, 3
      %p136 = pnand %p134, %p135
      %p137 = pneg %p136
      // Predicated region
      $region9: #{tpu_custom_call.1} parent=5 // pred_check
        _
      $region10: #{tpu_custom_call.1} parent=5 // pred_check_branch
        %139 = sbr.rel (%p136) target = $region12
      $region11: #{tpu_custom_call.1} parent=5 // pred_region
        %s140 = ssub.s32 %s22, 1
      $region12: #{tpu_custom_call.1} parent=5 // pred_fallthru
        _
      %p141 = scmp.lt.s32.totalorder %s22, 2
      // Predicated region
      $region13: #{tpu_custom_call.1} parent=5 // pred_check
        %p142 = pneg %p141
      $region14: #{tpu_custom_call.1} parent=5 // pred_check_branch
        %144 = sbr.rel (%p142) target = $region16
      $region15: #{tpu_custom_call.1} parent=5 // pred_region
        // Predicated region
        $region17: #{tpu_custom_call.1} parent=15 // pred_check
          %p145 = pneg %p42
        $region18: #{tpu_custom_call.1} parent=15 // pred_check_branch
          %147 = sbr.rel (%p145) target = $region20
        $region19: #{tpu_custom_call.1} parent=15 // pred_region
          %s148 = sand.u32 %s32, 1
          %s149 = scalar_lea.sflag [#allocation3], %s148
          %s150 = sand.u32 %s32, 1
          %s151 = smul.addr %s150, 8
          %s152 = scalar_lea.vmem [#allocation2], %s151
          %154 = vsyncadd %s149, 0
          %s155 = smul.addr %s22, 8
          %s156 = scalar_lea.hbm %s0, %s155
          %s158 = sshll.u32 %s156, 4
          %s159 = int_to_ptr.hbm [resolvable:$true] %s158
          %s160 = sshll.u32 %s152, 4
          %s161 = int_to_ptr.vmem [resolvable:$true] %s160
          %163 = dma.hbm_to_vmem [thread:$0]  %s159, 128, %s161, %s149
        $region20: #{tpu_custom_call.1} parent=15 // pred_fallthru
          _
        // Predicated region
        $region21: #{tpu_custom_call.1} parent=15 // pred_check
          %p164 = pneg %p68
        $region22: #{tpu_custom_call.1} parent=15 // pred_check_branch
          %166 = sbr.rel (%p164) target = $region24
        $region23: #{tpu_custom_call.1} parent=15 // pred_region
          %s167 = sand.u32 %s58, 1
          %s168 = scalar_lea.sflag [#allocation6], %s167
          %s169 = sand.u32 %s58, 1
          %s170 = smul.addr %s169, 8
          %s171 = scalar_lea.vmem [#allocation5], %s170
          %173 = vsyncadd %s168, 0
          %s174 = smul.addr %s22, 8
          %s175 = scalar_lea.hbm %s1, %s174
          %s177 = sshll.u32 %s175, 4
          %s178 = int_to_ptr.hbm [resolvable:$true] %s177
          %s179 = sshll.u32 %s171, 4
          %s180 = int_to_ptr.vmem [resolvable:$true] %s179
          %182 = dma.hbm_to_vmem [thread:$0]  %s178, 128, %s180, %s168
        $region24: #{tpu_custom_call.1} parent=15 // pred_fallthru
          _
      $region16: #{tpu_custom_call.1} parent=5 // pred_fallthru
        _
      %p183 = scmp.le.s32.totalorder 1, %s22
      %p184 = scmp.lt.s32.totalorder %s22, 3
      %p185 = pnand %p183, %p184
      %p186 = pneg %p185
      // Predicated region
      $region25: #{tpu_custom_call.1} parent=5 // pred_check
        _
      $region26: #{tpu_custom_call.1} parent=5 // pred_check_branch
        %188 = sbr.rel (%p185) target = $region28
      $region27: #{tpu_custom_call.1} parent=5 // pred_region
        %s189 = ssub.s32 %s22, 1
        %s190 = sand.u32 %s35, 1
        %s191 = scalar_lea.sflag [#allocation3], %s190
        %s192 = sand.u32 %s35, 1
        %s193 = smul.addr %s192, 8
        %s194 = scalar_lea.vmem [#allocation2], %s193
        // Predicated region
        $region29: #{tpu_custom_call.1} parent=27 // pred_check
          %p195 = pneg %p48
        $region30: #{tpu_custom_call.1} parent=27 // pred_check_branch
          %197 = sbr.rel (%p195) target = $region32
        $region31: #{tpu_custom_call.1} parent=27 // pred_region
          %199 = dma.done %s191, 128
        $region32: #{tpu_custom_call.1} parent=27 // pred_fallthru
          _
        %s200 = sand.u32 %s61, 1
        %s201 = scalar_lea.sflag [#allocation6], %s200
        %s202 = sand.u32 %s61, 1
        %s203 = smul.addr %s202, 8
        %s204 = scalar_lea.vmem [#allocation5], %s203
        // Predicated region
        $region33: #{tpu_custom_call.1} parent=27 // pred_check
          %p205 = pneg %p74
        $region34: #{tpu_custom_call.1} parent=27 // pred_check_branch
          %207 = sbr.rel (%p205) target = $region36
        $region35: #{tpu_custom_call.1} parent=27 // pred_region
          %209 = dma.done %s201, 128
        $region36: #{tpu_custom_call.1} parent=27 // pred_fallthru
          _
        %s210 = sand.u32 %s35, 1
        %s211 = scalar_lea.sflag [#allocation3], %s210
        %s212 = sand.u32 %s35, 1
        %s213 = smul.addr %s212, 8
        %s214 = scalar_lea.vmem [#allocation2], %s213
        %p215 = pneg %p48
        %p216 = pneg %p45
        %s217 = sand.u32 %s61, 1
        %s218 = scalar_lea.sflag [#allocation6], %s217
        %s219 = sand.u32 %s61, 1
        %s220 = smul.addr %s219, 8
        %s221 = scalar_lea.vmem [#allocation5], %s220
        %p222 = pneg %p74
        %p223 = pneg %p71
        %p224 = pneg %p100
        %p225 = pneg %p97
        %s226 = sand.u32 %s87, 1
        %s227 = scalar_lea.sflag [#allocation4], %s226
        %s228 = sand.u32 %s87, 1
        %s229 = smul.addr %s228, 8
        %s230 = scalar_lea.vmem [#allocation7], %s229
        %p231 = pneg %p126
        %p232 = pneg %p123
        %s233 = sand.u32 %s113, 1
        %s234 = scalar_lea.sflag [#allocation9], %s233
        %s235 = sand.u32 %s113, 1
        %s236 = smul.addr %s235, 8
        %s237 = scalar_lea.vmem [#allocation8], %s236
        %v238 = vld [vmem:[%s194] sm:$0xff]
        %v239 = vld [vmem:[%s204] sm:$0xff]
        %v240 = vrsqrt.pop %v239
        %v241 = vmul.f32 %v240, %v239
        %v242 = vmul.f32 %v241, %v240
        %v243 = vmul.f32 0.5, %v242
        %v244 = vsub.f32 1.5, %v243
        %v245 = vmul.f32 %v240, %v244
        %v246 = vmul.f32 %v239, %v245
        %vm247 = vcmp.eq.f32.partialorder %v239, inf
        %v248 = vsel %vm247, %v239, %v246
        %vm249 = vcmp.eq.f32.partialorder %v239, 0.0
        %v250 = vand.u32 %v239, 2147483648
        %v251 = vsel %vm249, %v250, %v248
        %v252 = vrsqrt.pop %v239
        %v253 = vmul.f32 %v252, %v239
        %v254 = vmul.f32 %v253, %v252
        %v255 = vmul.f32 0.5, %v254
        %v256 = vsub.f32 1.5, %v255
        %v257 = vmul.f32 %v252, %v256
        %vm258 = vweird.f32 %v239
        %vm259 = vweird.f32 %v252
        %vm260 = vmor %vm258, %vm259
        %v261 = vsel %vm260, %v252, %v257
        %v262 = vmul.f32 %v238, %v261
        %v263 = vmul.f32 %v262, -0.5
        %v264 = vmul.f32 %v263, %v262
        %v265 = vmul.f32 %v264, 1.442695
        %v266 = vpow.pop %v265
        %v267 = vmul.f32 %v266, 0.3989423
        %v268 = vmul.f32 %v262, 0.70710677
        %v269 = vmul.f32 %v268, %v268
        %v270 = vmin.f32 16.0, %v269
        %v271 = vmul.f32 %v270, 2.1237322e-06
        %v272 = vadd.f32 %v271, 0.00028619796
        %v273 = vmul.f32 %v270, %v272
        %v274 = vadd.f32 %v273, 0.0036580483
        %v275 = vmul.f32 %v270, %v274
        %v276 = vadd.f32 %v275, 0.05243302
        %v277 = vmul.f32 %v270, %v276
        %v278 = vadd.f32 %v277, 0.18741608
        %v279 = vmul.f32 %v270, %v278
        %v280 = vadd.f32 %v279, 1.1283791
        %v281 = vmul.f32 %v268, %v280
        %v282 = vmul.f32 %v270, 3.8918573e-05
        %v283 = vadd.f32 %v282, 0.001143296
        %v284 = vmul.f32 %v270, %v283
        %v285 = vadd.f32 %v284, 0.014752088
        %v286 = vmul.f32 %v270, %v285
        %v287 = vadd.f32 %v286, 0.112945676
        %v288 = vmul.f32 %v270, %v287
        %v289 = vadd.f32 %v288, 0.4994258
        %v290 = vmul.f32 %v270, %v289
        %v291 = vadd.f32 %v290, 1.0
        %v292 = vrcp.pop %v291
        %v293 = vmul.f32 %v291, %v292
        %v294 = vsub.f32 1.0, %v293
        %v295 = vmul.f32 %v292, %v294
        %v296 = vadd.f32 %v292, %v295
        %vm297 = vweird.f32 %v291
        %vm298 = vweird.f32 %v292
        %vm299 = vmor %vm297, %vm298
        %v300 = vsel %vm299, %v292, %v296
        %v301 = vand.u32 2147483647, %v291
        %vm302 = vcmp.eq.f32.partialorder %v301, 8.507059e+37
        %v303 = vand.u32 %v291, 2147483648
        %v304 = vor.u32 1.1754944e-38, %v303
        %v305 = vsel %vm302, %v304, %v300
        %v306 = vmul.f32 %v281, %v305
        %v307 = vmin.f32 %v306, 1.0
        %v308 = vmax.f32 %v307, -1.0
        %v309 = vadd.f32 %v308, 1.0
        %v310 = vmul.f32 %v309, 0.5
        %v311 = vmul.f32 %v238, %v310
        %v312 = vmul.f32 %v251, %v267
        %v313 = vadd.f32 %v311, %v312
        %v314 = vmul.f32 %v238, %v238
        %v315 = vadd.f32 %v314, %v239
        %v316 = vmul.f32 %v315, %v310
        %v317 = vmul.f32 %v238, %v251
        %v318 = vmul.f32 %v317, %v267
        %v319 = vadd.f32 %v316, %v318
        %v320 = vmul.f32 %v313, %v313
        %v321 = vsub.f32 %v319, %v320
        %322 = vst [vmem:[%s230] sm:$0xff] %v313
        %323 = vst [vmem:[%s237] sm:$0xff] %v321
        %s324 = sand.u32 %s87, 1
        %s325 = scalar_lea.sflag [#allocation4], %s324
        %s326 = sand.u32 %s87, 1
        %s327 = smul.addr %s326, 8
        %s328 = scalar_lea.vmem [#allocation7], %s327
        %s329 = sand.u32 %s113, 1
        %s330 = scalar_lea.sflag [#allocation9], %s329
        %s331 = sand.u32 %s113, 1
        %s332 = smul.addr %s331, 8
        %s333 = scalar_lea.vmem [#allocation8], %s332
        // Predicated region
        $region37: #{tpu_custom_call.1} parent=27 // pred_check
          %p334 = pneg %p97
        $region38: #{tpu_custom_call.1} parent=27 // pred_check_branch
          %336 = sbr.rel (%p334) target = $region40
        $region39: #{tpu_custom_call.1} parent=27 // pred_region
          %338 = vsyncadd %s325, 0
          %s339 = smul.addr %s27, 8
          %s340 = scalar_lea.hbm %s2, %s339
          %s342 = sshll.u32 %s328, 4
          %s343 = int_to_ptr.vmem [resolvable:$true] %s342
          %s344 = sshll.u32 %s340, 4
          %s345 = int_to_ptr.hbm [resolvable:$true] %s344
          %347 = dma.vmem_to_hbm [thread:$0]  %s343, 128, %s345, %s325
        $region40: #{tpu_custom_call.1} parent=27 // pred_fallthru
          _
        // Predicated region
        $region41: #{tpu_custom_call.1} parent=27 // pred_check
          %p348 = pneg %p123
        $region42: #{tpu_custom_call.1} parent=27 // pred_check_branch
          %350 = sbr.rel (%p348) target = $region44
        $region43: #{tpu_custom_call.1} parent=27 // pred_region
          %352 = vsyncadd %s330, 0
          %s353 = smul.addr %s27, 8
          %s354 = scalar_lea.hbm %s3, %s353
          %s356 = sshll.u32 %s333, 4
          %s357 = int_to_ptr.vmem [resolvable:$true] %s356
          %s358 = sshll.u32 %s354, 4
          %s359 = int_to_ptr.hbm [resolvable:$true] %s358
          %361 = dma.vmem_to_hbm [thread:$0]  %s357, 128, %s359, %s330
        $region44: #{tpu_custom_call.1} parent=27 // pred_fallthru
          _
      $region28: #{tpu_custom_call.1} parent=5 // pred_fallthru
        _
      %p362 = scmp.le.s32.totalorder 2, %s22
      // Predicated region
      $region45: #{tpu_custom_call.1} parent=5 // pred_check
        %p363 = pneg %p362
      $region46: #{tpu_custom_call.1} parent=5 // pred_check_branch
        %365 = sbr.rel (%p363) target = $region48
      $region47: #{tpu_custom_call.1} parent=5 // pred_region
        %s366 = ssub.s32 %s22, 2
        // Predicated region
        $region49: #{tpu_custom_call.1} parent=47 // pred_check
          %p367 = pneg %p103
        $region50: #{tpu_custom_call.1} parent=47 // pred_check_branch
          %369 = sbr.rel (%p367) target = $region52
        $region51: #{tpu_custom_call.1} parent=47 // pred_region
          %s370 = sand.u32 %s88, 1
          %s371 = scalar_lea.sflag [#allocation4], %s370
          %s372 = sand.u32 %s88, 1
          %s373 = smul.addr %s372, 8
          %s374 = scalar_lea.vmem [#allocation7], %s373
          %376 = dma.done %s371, 128
        $region52: #{tpu_custom_call.1} parent=47 // pred_fallthru
          _
        // Predicated region
        $region53: #{tpu_custom_call.1} parent=47 // pred_check
          %p377 = pneg %p129
        $region54: #{tpu_custom_call.1} parent=47 // pred_check_branch
          %379 = sbr.rel (%p377) target = $region56
        $region55: #{tpu_custom_call.1} parent=47 // pred_region
          %s380 = sand.u32 %s114, 1
          %s381 = scalar_lea.sflag [#allocation9], %s380
          %s382 = sand.u32 %s114, 1
          %s383 = smul.addr %s382, 8
          %s384 = scalar_lea.vmem [#allocation8], %s383
          %386 = dma.done %s381, 128
        $region56: #{tpu_custom_call.1} parent=47 // pred_fallthru
          _
      $region48: #{tpu_custom_call.1} parent=5 // pred_fallthru
        _
    $region6: #{tpu_custom_call.1} parent=1 // loop_footer
      %s26 = sadd.s32 1, %s22
    $region7: #{tpu_custom_call.1} parent=1 // loop_footer_branch
      %21 = sbr.rel target = $region3
    $region8: #{tpu_custom_call.1} parent=1 // loop_exit
      _
    %387 = vsyncpa [#allocation3], 1
    %s388 = scalar_lea.sflag [#allocation3], 1
    %389 = vsyncpa %s388, 1
    %390 = vsyncpa [#allocation6], 1
    %s391 = scalar_lea.sflag [#allocation6], 1
    %392 = vsyncpa %s391, 1
    %393 = vsyncpa [#allocation4], 1
    %s394 = scalar_lea.sflag [#allocation4], 1
    %395 = vsyncpa %s394, 1
    %396 = vsyncpa [#allocation9], 1
    %s397 = scalar_lea.sflag [#allocation9], 1
    %398 = vsyncpa %s397, 1

</llo_original>
